<compile_context>
chip_gen: v7x
topology: tpu7x:2x2x1
jax: 0.10.0
libtpu: 0.0.40
codegen_flags: <defaults>
</compile_context>

<pallas_src>
import functools

import jax
import jax.numpy as jnp
from jax.experimental import pallas as pl
from jax.experimental.pallas import tpu as pltpu


def _round_up(x, m):
    return (x + m - 1) // m * m


def _moe_kernel(ctx_ref, x_ref, wg_ref, bg_ref, w1_ref, b1_ref, w2_ref, b2_ref,
                o_ref, *, hidden_size):
    f32 = jnp.float32
    hp = jax.lax.Precision.HIGHEST

    # ---- gating logits in the (TB, E*H) expanded layout (each expert's logit
    #      replicated across its H lanes).  Small C: C broadcast-FMAs on the VPU
    #      (exact f32, frees the MXU/vex slot).  Large C: MXU dot.
    ctx = ctx_ref[...]                                      # (TB, C)
    C = ctx.shape[1]
    if C <= 32:
        logits = bg_ref[...] + ctx[:, 0:1] * wg_ref[0:1, :]
        for c in range(1, C):
            logits = logits + ctx[:, c:c + 1] * wg_ref[c:c + 1, :]
    else:
        logits = jnp.dot(ctx, wg_ref[...], preferred_element_type=f32,
                         precision=hp) + bg_ref[...]

    # ---- unnormalized softmax; normalization deferred to the (TB, O) output.
    m = jnp.max(logits, axis=-1, keepdims=True)             # lane max == expert max
    e = jnp.exp(logits - m)                                 # (TB, E*H), unnormalized
    # lane sum counts each expert H times -> true softmax denominator Z:
    denom = jnp.sum(e, axis=-1, keepdims=True) * (1.0 / hidden_size)   # (TB, 1)

    # ---- first layer.  input_size == 1 fast path: VPU broadcast FMA.
    x = x_ref[...]                                          # (TB, I)
    if x.shape[1] == 1:
        h = x * w1_ref[...] + b1_ref[...]                   # (TB,1)*(1,EH) -> (TB,EH)
    else:
        h = jnp.dot(x, w1_ref[...], preferred_element_type=f32,
                    precision=hp) + b1_ref[...]
    h = jnp.maximum(h, 0.0)                                 # ReLU

    # ---- second layer + weighted expert combine.
    if o_ref.shape[-1] == 1:
        # O == 1: VPU multiply + XLU lane reduction -> (TB, 1) directly.
        # w2_ref / b2_ref are (1, E*H) rows; b2 replicated per expert and /H.
        contrib = e * (h * w2_ref[...] + b2_ref[...])       # (TB, E*H)
        out_unnorm = jnp.sum(contrib, axis=-1, keepdims=True)
    else:
        hg = h * e
        out_unnorm = (jnp.dot(hg, w2_ref[...], preferred_element_type=f32,
                              precision=hp)
                      + jnp.dot(e, b2_ref[...], preferred_element_type=f32,
                                precision=hp))
    o_ref[...] = out_unnorm / denom                         # deferred normalization


def prepare_fused_params(params):
    """One-time re-layout of stacked expert params into lane-dense fused operands.

    Hoisted out of the per-forward path (perf review): call once, reuse every step.
    """
    wg, bg, w1, b1, w2, b2 = params
    E, I, H = w1.shape
    O = w2.shape[-1]
    wg_exp = jnp.repeat(wg, H, axis=1)                            # (C, E*H)
    bg_exp = jnp.repeat(bg, H, axis=1)                            # (1, E*H)
    w1_f = jnp.transpose(w1, (1, 0, 2)).reshape(I, E * H)         # (I, E*H)
    b1_f = b1.reshape(1, E * H)                                   # (1, E*H)
    w2_f = w2.reshape(E * H, O)                                   # (E*H, O)
    b2_f = jnp.repeat(b2.reshape(E, O), H, axis=0) / float(H)     # (E*H, O)
    if O == 1:
        # Row layout for the O==1 VPU/XLU path (no padded MXU operand / output).
        w2_f = w2_f.reshape(1, E * H)
        b2_f = b2_f.reshape(1, E * H)
    weights = (wg_exp, bg_exp, w1_f, b1_f, w2_f, b2_f)
    return {"weights": weights, "hidden_size": H, "output_size": O}


def _choose_batch_tile(batch):
    tb = min(2048, _round_up(batch, 8))
    # Keep >= 2 grid steps when the batch allows it, so a 2-TensorCore chip
    # (v7x megacore) can shard the "parallel" grid axis; tiles stay 8-aligned.
    if batch > 8 and pl.cdiv(batch, tb) < 2:
        tb = max(8, _round_up(pl.cdiv(batch, 2), 8))
    return tb


def moe_forward(context, x, fused):
    """context: (B, C), x: (B, I) -> (B, O). Fused MoE forward."""
    wg_exp, bg_exp, w1_f, b1_f, w2_f, b2_f = fused["weights"]
    H = fused["hidden_size"]
    O = fused["output_size"]
    B, C = context.shape
    I = x.shape[1]

    TB = _choose_batch_tile(B)
    grid = (pl.cdiv(B, TB),)      # ragged last block masked by Pallas: no pad/slice

    def rep(arr):                 # grid-resident (replicated) weight spec
        return pl.BlockSpec(arr.shape, lambda i: (0, 0))

    compiler_params = pltpu.CompilerParams(
        dimension_semantics=("parallel",),
        # Big batch tiles keep ~6 live (TB,128) f32 temporaries; raise the scoped
        # VMEM limit explicitly (v5e default is only 16 MiB) when TB is large.
        vmem_limit_bytes=(32 * 1024 * 1024) if TB >= 1024 else None,
    )

    return pl.pallas_call(
        functools.partial(_moe_kernel, hidden_size=H),
        out_shape=jax.ShapeDtypeStruct((B, O), jnp.float32),   # O lanes, no 128-pad
        grid=grid,
        in_specs=[
            pl.BlockSpec((TB, C), lambda i: (i, 0)),    # context tile
            pl.BlockSpec((TB, I), lambda i: (i, 0)),    # input tile
            rep(wg_exp), rep(bg_exp),                   # gating (expanded)
            rep(w1_f), rep(b1_f),                       # layer 1 (fused experts)
            rep(w2_f), rep(b2_f),                       # layer 2 (fused experts)
        ],
        out_specs=pl.BlockSpec((TB, O), lambda i: (i, 0)),
        compiler_params=compiler_params,
    )(context, x, wg_exp, bg_exp, w1_f, b1_f, w2_f, b2_f)


def make_params(key, num_experts=4, context_size=8, input_size=1,
                hidden_size=32, output_size=1):
    ks = jax.random.split(key, 6)
    wg = 0.1 * jax.random.normal(ks[0], (context_size, num_experts), jnp.float32)
    bg = 0.1 * jax.random.normal(ks[1], (1, num_experts), jnp.float32)
    w1 = 0.1 * jax.random.normal(ks[2], (num_experts, input_size, hidden_size), jnp.float32)
    b1 = 0.1 * jax.random.normal(ks[3], (num_experts, 1, hidden_size), jnp.float32)
    w2 = 0.1 * jax.random.normal(ks[4], (num_experts, hidden_size, output_size), jnp.float32)
    b2 = 0.1 * jax.random.normal(ks[5], (num_experts, 1, output_size), jnp.float32)
    return wg, bg, w1, b1, w2, b2


def moe_reference(context, x, params):
    wg, bg, w1, b1, w2, b2 = params
    hp = jax.lax.Precision.HIGHEST
    gate = jax.nn.softmax(jnp.dot(context, wg, precision=hp) + bg, axis=-1)   # (B, E)
    outs = []
    for k in range(w1.shape[0]):
        h = jnp.maximum(jnp.dot(x, w1[k], precision=hp) + b1[k], 0.0)
        outs.append(jnp.dot(h, w2[k], precision=hp) + b2[k])
    expert_outputs = jnp.stack(outs, axis=1)                                   # (B, E, O)
    return jnp.sum(gate[:, :, None] * expert_outputs, axis=1)                  # (B, O)


if __name__ == "__main__":
    key = jax.random.PRNGKey(0)
    k_ctx, k_x, k_p = jax.random.split(key, 3)

    B, C, I = 8, 8, 1
    context = jax.random.normal(k_ctx, (B, C), jnp.float32)
    x = jax.random.normal(k_x, (B, I), jnp.float32)
    params = make_params(k_p)

    fused = prepare_fused_params(params)      # one-time weight re-layout (hoisted)
    out = moe_forward(context, x, fused)
    out = jax.block_until_ready(out)

    ref = moe_reference(context, x, params)
    assert out.shape == (B, 1)
    assert jnp.allclose(out, ref, atol=1e-5, rtol=1e-5), "mismatch vs reference"
    print("KERNEL_OK")
</pallas_src>

<mosaic_0001>
module attributes {stable_mosaic.version = 11 : i64} {
  func.func @_moe_kernel(%arg0: i32, %arg1: memref<8x8xf32, #tpu.memory_space<vmem>>, %arg2: memref<8x1xf32, #tpu.memory_space<vmem>>, %arg3: memref<8x128xf32, #tpu.memory_space<vmem>>, %arg4: memref<1x128xf32, #tpu.memory_space<vmem>>, %arg5: memref<1x128xf32, #tpu.memory_space<vmem>>, %arg6: memref<1x128xf32, #tpu.memory_space<vmem>>, %arg7: memref<1x128xf32, #tpu.memory_space<vmem>>, %arg8: memref<1x128xf32, #tpu.memory_space<vmem>>, %arg9: memref<8x1xf32, #tpu.memory_space<vmem>>) attributes {dimension_semantics = [#tpu.dimension_semantics<parallel>], iteration_bounds = array<i64: 1>, scalar_prefetch = 0 : i64, scratch_operands = 0 : i64, tpu.core_type = #tpu.core_type<tc>, window_params = [{transform_indices = @transform_0, window_bounds = array<i64: 8, 8>}, {transform_indices = @transform_1, window_bounds = array<i64: 8, 1>}, {pipeline_mode = #tpu.pipeline_mode<synchronous>, transform_indices = @transform_2, window_bounds = array<i64: 8, 128>}, {pipeline_mode = #tpu.pipeline_mode<synchronous>, transform_indices = @transform_3, window_bounds = array<i64: 1, 128>}, {pipeline_mode = #tpu.pipeline_mode<synchronous>, transform_indices = @transform_4, window_bounds = array<i64: 1, 128>}, {pipeline_mode = #tpu.pipeline_mode<synchronous>, transform_indices = @transform_5, window_bounds = array<i64: 1, 128>}, {pipeline_mode = #tpu.pipeline_mode<synchronous>, transform_indices = @transform_6, window_bounds = array<i64: 1, 128>}, {pipeline_mode = #tpu.pipeline_mode<synchronous>, transform_indices = @transform_7, window_bounds = array<i64: 1, 128>}, {transform_indices = @transform_8, window_bounds = array<i64: 8, 1>}]} {
    %c0 = arith.constant 0 : index
    %c0_0 = arith.constant 0 : index
    %0 = vector.load %arg1[%c0, %c0_0] : memref<8x8xf32, #tpu.memory_space<vmem>>, vector<8x8xf32>
    %c0_1 = arith.constant 0 : index
    %c0_2 = arith.constant 0 : index
    %1 = vector.load %arg4[%c0_1, %c0_2] : memref<1x128xf32, #tpu.memory_space<vmem>>, vector<1x128xf32>
    %2 = vector.extract_strided_slice %0 {offsets = [0, 0], sizes = [8, 1], strides = [1, 1]} : vector<8x8xf32> to vector<8x1xf32>
    %c0_3 = arith.constant 0 : index
    %c0_4 = arith.constant 0 : index
    %3 = vector.load %arg3[%c0_3, %c0_4] : memref<8x128xf32, #tpu.memory_space<vmem>>, vector<1x128xf32>
    %4 = vector.broadcast %2 : vector<8x1xf32> to vector<8x128xf32>
    %5 = vector.broadcast %3 : vector<1x128xf32> to vector<8x128xf32>
    %6 = arith.mulf %4, %5 : vector<8x128xf32>
    %7 = vector.broadcast %1 : vector<1x128xf32> to vector<8x128xf32>
    %8 = arith.addf %7, %6 : vector<8x128xf32>
    %9 = vector.extract_strided_slice %0 {offsets = [0, 1], sizes = [8, 1], strides = [1, 1]} : vector<8x8xf32> to vector<8x1xf32>
    %c1 = arith.constant 1 : index
    %c0_5 = arith.constant 0 : index
    %10 = vector.load %arg3[%c1, %c0_5] : memref<8x128xf32, #tpu.memory_space<vmem>>, vector<1x128xf32>
    %11 = vector.broadcast %9 : vector<8x1xf32> to vector<8x128xf32>
    %12 = vector.broadcast %10 : vector<1x128xf32> to vector<8x128xf32>
    %13 = arith.mulf %11, %12 : vector<8x128xf32>
    %14 = arith.addf %8, %13 : vector<8x128xf32>
    %15 = vector.extract_strided_slice %0 {offsets = [0, 2], sizes = [8, 1], strides = [1, 1]} : vector<8x8xf32> to vector<8x1xf32>
    %c2 = arith.constant 2 : index
    %c0_6 = arith.constant 0 : index
    %16 = vector.load %arg3[%c2, %c0_6] : memref<8x128xf32, #tpu.memory_space<vmem>>, vector<1x128xf32>
    %17 = vector.broadcast %15 : vector<8x1xf32> to vector<8x128xf32>
    %18 = vector.broadcast %16 : vector<1x128xf32> to vector<8x128xf32>
    %19 = arith.mulf %17, %18 : vector<8x128xf32>
    %20 = arith.addf %14, %19 : vector<8x128xf32>
    %21 = vector.extract_strided_slice %0 {offsets = [0, 3], sizes = [8, 1], strides = [1, 1]} : vector<8x8xf32> to vector<8x1xf32>
    %c3 = arith.constant 3 : index
    %c0_7 = arith.constant 0 : index
    %22 = vector.load %arg3[%c3, %c0_7] : memref<8x128xf32, #tpu.memory_space<vmem>>, vector<1x128xf32>
    %23 = vector.broadcast %21 : vector<8x1xf32> to vector<8x128xf32>
    %24 = vector.broadcast %22 : vector<1x128xf32> to vector<8x128xf32>
    %25 = arith.mulf %23, %24 : vector<8x128xf32>
    %26 = arith.addf %20, %25 : vector<8x128xf32>
    %27 = vector.extract_strided_slice %0 {offsets = [0, 4], sizes = [8, 1], strides = [1, 1]} : vector<8x8xf32> to vector<8x1xf32>
    %c4 = arith.constant 4 : index
    %c0_8 = arith.constant 0 : index
    %28 = vector.load %arg3[%c4, %c0_8] : memref<8x128xf32, #tpu.memory_space<vmem>>, vector<1x128xf32>
    %29 = vector.broadcast %27 : vector<8x1xf32> to vector<8x128xf32>
    %30 = vector.broadcast %28 : vector<1x128xf32> to vector<8x128xf32>
    %31 = arith.mulf %29, %30 : vector<8x128xf32>
    %32 = arith.addf %26, %31 : vector<8x128xf32>
    %33 = vector.extract_strided_slice %0 {offsets = [0, 5], sizes = [8, 1], strides = [1, 1]} : vector<8x8xf32> to vector<8x1xf32>
    %c5 = arith.constant 5 : index
    %c0_9 = arith.constant 0 : index
    %34 = vector.load %arg3[%c5, %c0_9] : memref<8x128xf32, #tpu.memory_space<vmem>>, vector<1x128xf32>
    %35 = vector.broadcast %33 : vector<8x1xf32> to vector<8x128xf32>
    %36 = vector.broadcast %34 : vector<1x128xf32> to vector<8x128xf32>
    %37 = arith.mulf %35, %36 : vector<8x128xf32>
    %38 = arith.addf %32, %37 : vector<8x128xf32>
    %39 = vector.extract_strided_slice %0 {offsets = [0, 6], sizes = [8, 1], strides = [1, 1]} : vector<8x8xf32> to vector<8x1xf32>
    %c6 = arith.constant 6 : index
    %c0_10 = arith.constant 0 : index
    %40 = vector.load %arg3[%c6, %c0_10] : memref<8x128xf32, #tpu.memory_space<vmem>>, vector<1x128xf32>
    %41 = vector.broadcast %39 : vector<8x1xf32> to vector<8x128xf32>
    %42 = vector.broadcast %40 : vector<1x128xf32> to vector<8x128xf32>
    %43 = arith.mulf %41, %42 : vector<8x128xf32>
    %44 = arith.addf %38, %43 : vector<8x128xf32>
    %45 = vector.extract_strided_slice %0 {offsets = [0, 7], sizes = [8, 1], strides = [1, 1]} : vector<8x8xf32> to vector<8x1xf32>
    %c7 = arith.constant 7 : index
    %c0_11 = arith.constant 0 : index
    %46 = vector.load %arg3[%c7, %c0_11] : memref<8x128xf32, #tpu.memory_space<vmem>>, vector<1x128xf32>
    %47 = vector.broadcast %45 : vector<8x1xf32> to vector<8x128xf32>
    %48 = vector.broadcast %46 : vector<1x128xf32> to vector<8x128xf32>
    %49 = arith.mulf %47, %48 : vector<8x128xf32>
    %50 = arith.addf %44, %49 : vector<8x128xf32>
    %cst = arith.constant dense<0xFF800000> : vector<8xf32>
    %51 = vector.multi_reduction <maximumf>, %50, %cst [1] : vector<8x128xf32> to vector<8xf32>
    %52 = vector.shape_cast %51 : vector<8xf32> to vector<8x1xf32>
    %53 = vector.broadcast %52 : vector<8x1xf32> to vector<8x128xf32>
    %54 = arith.subf %50, %53 : vector<8x128xf32>
    %55 = math.exp %54 : vector<8x128xf32>
    %cst_12 = arith.constant dense<0.000000e+00> : vector<8xf32>
    %56 = vector.multi_reduction <add>, %55, %cst_12 [1] : vector<8x128xf32> to vector<8xf32>
    %57 = vector.shape_cast %56 : vector<8xf32> to vector<8x1xf32>
    %cst_13 = arith.constant 3.125000e-02 : f32
    %58 = vector.broadcast %cst_13 : f32 to vector<8x1xf32>
    %59 = arith.mulf %57, %58 : vector<8x1xf32>
    %c0_14 = arith.constant 0 : index
    %c0_15 = arith.constant 0 : index
    %60 = vector.load %arg2[%c0_14, %c0_15] : memref<8x1xf32, #tpu.memory_space<vmem>>, vector<8x1xf32>
    %c0_16 = arith.constant 0 : index
    %c0_17 = arith.constant 0 : index
    %61 = vector.load %arg5[%c0_16, %c0_17] : memref<1x128xf32, #tpu.memory_space<vmem>>, vector<1x128xf32>
    %62 = vector.broadcast %60 : vector<8x1xf32> to vector<8x128xf32>
    %63 = vector.broadcast %61 : vector<1x128xf32> to vector<8x128xf32>
    %64 = arith.mulf %62, %63 : vector<8x128xf32>
    %c0_18 = arith.constant 0 : index
    %c0_19 = arith.constant 0 : index
    %65 = vector.load %arg6[%c0_18, %c0_19] : memref<1x128xf32, #tpu.memory_space<vmem>>, vector<1x128xf32>
    %66 = vector.broadcast %65 : vector<1x128xf32> to vector<8x128xf32>
    %67 = arith.addf %64, %66 : vector<8x128xf32>
    %cst_20 = arith.constant 0.000000e+00 : f32
    %68 = vector.broadcast %cst_20 : f32 to vector<8x128xf32>
    %69 = arith.maximumf %67, %68 : vector<8x128xf32>
    %c0_21 = arith.constant 0 : index
    %c0_22 = arith.constant 0 : index
    %70 = vector.load %arg7[%c0_21, %c0_22] : memref<1x128xf32, #tpu.memory_space<vmem>>, vector<1x128xf32>
    %71 = vector.broadcast %70 : vector<1x128xf32> to vector<8x128xf32>
    %72 = arith.mulf %69, %71 : vector<8x128xf32>
    %c0_23 = arith.constant 0 : index
    %c0_24 = arith.constant 0 : index
    %73 = vector.load %arg8[%c0_23, %c0_24] : memref<1x128xf32, #tpu.memory_space<vmem>>, vector<1x128xf32>
    %74 = vector.broadcast %73 : vector<1x128xf32> to vector<8x128xf32>
    %75 = arith.addf %72, %74 : vector<8x128xf32>
    %76 = arith.mulf %55, %75 : vector<8x128xf32>
    %cst_25 = arith.constant dense<0.000000e+00> : vector<8xf32>
    %77 = vector.multi_reduction <add>, %76, %cst_25 [1] : vector<8x128xf32> to vector<8xf32>
    %78 = vector.shape_cast %77 : vector<8xf32> to vector<8x1xf32>
    %79 = arith.divf %78, %59 : vector<8x1xf32>
    %c0_26 = arith.constant 0 : index
    %c0_27 = arith.constant 0 : index
    %80 = vector.load %arg9[%c0_26, %c0_27] : memref<8x1xf32, #tpu.memory_space<vmem>>, vector<8x1xf32>
    tpu.vector_store %arg9[%c0_26, %c0_27], %79 {strides = array<i32>} : memref<8x1xf32, #tpu.memory_space<vmem>>, vector<8x1xf32>,
    return
  }
  func.func @transform_0(%arg0: i32) -> (i32, i32) {
    %c0_i32 = arith.constant 0 : i32
    %c0_i32_0 = arith.constant 0 : i32
    return %arg0, %c0_i32 : i32, i32
  }
  func.func @transform_1(%arg0: i32) -> (i32, i32) {
    %c0_i32 = arith.constant 0 : i32
    %c0_i32_0 = arith.constant 0 : i32
    return %arg0, %c0_i32 : i32, i32
  }
  func.func @transform_2(%arg0: i32) -> (i32, i32) {
    %c0_i32 = arith.constant 0 : i32
    %c0_i32_0 = arith.constant 0 : i32
    %c0_i32_1 = arith.constant 0 : i32
    return %c0_i32, %c0_i32_0 : i32, i32
  }
  func.func @transform_3(%arg0: i32) -> (i32, i32) {
    %c0_i32 = arith.constant 0 : i32
    %c0_i32_0 = arith.constant 0 : i32
    %c0_i32_1 = arith.constant 0 : i32
    return %c0_i32, %c0_i32_0 : i32, i32
  }
  func.func @transform_4(%arg0: i32) -> (i32, i32) {
    %c0_i32 = arith.constant 0 : i32
    %c0_i32_0 = arith.constant 0 : i32
    %c0_i32_1 = arith.constant 0 : i32
    return %c0_i32, %c0_i32_0 : i32, i32
  }
  func.func @transform_5(%arg0: i32) -> (i32, i32) {
    %c0_i32 = arith.constant 0 : i32
    %c0_i32_0 = arith.constant 0 : i32
    %c0_i32_1 = arith.constant 0 : i32
    return %c0_i32, %c0_i32_0 : i32, i32
  }
  func.func @transform_6(%arg0: i32) -> (i32, i32) {
    %c0_i32 = arith.constant 0 : i32
    %c0_i32_0 = arith.constant 0 : i32
    %c0_i32_1 = arith.constant 0 : i32
    return %c0_i32, %c0_i32_0 : i32, i32
  }
  func.func @transform_7(%arg0: i32) -> (i32, i32) {
    %c0_i32 = arith.constant 0 : i32
    %c0_i32_0 = arith.constant 0 : i32
    %c0_i32_1 = arith.constant 0 : i32
    return %c0_i32, %c0_i32_0 : i32, i32
  }
  func.func @transform_8(%arg0: i32) -> (i32, i32) {
    %c0_i32 = arith.constant 0 : i32
    %c0_i32_0 = arith.constant 0 : i32
    return %arg0, %c0_i32 : i32, i32
  }
}

</mosaic_0001>

<llo_original>
// kernel: tpu_custom_call.1
$region0: #{tpu_custom_call.1}
  #allocation0 [shape = 'u32[]', space=smem, size = 0x4, offset = 0x4, fixed_abs, tag = 'smem constant byte address 0x4 - core index']
  #allocation1 [shape = 'u32[144,128]{1,0:T(1,128)}', space=vmem, size = 0x12000, scoped, tag = 'internal scratch']
  %s0 = inlined_call_operand.vmem [shape: f32[8,8], index: 0, kind: input, shape index: {}]
  %s1 = inlined_call_operand.vmem [shape: f32[8,1], index: 1, kind: input, shape index: {}]
  %s2 = inlined_call_operand.vmem [shape: f32[8,128], index: 2, kind: input, shape index: {}]
  %s3 = inlined_call_operand.vmem [shape: f32[1,128], index: 3, kind: input, shape index: {}]
  %s4 = inlined_call_operand.vmem [shape: f32[1,128], index: 4, kind: input, shape index: {}]
  %s5 = inlined_call_operand.vmem [shape: f32[1,128], index: 5, kind: input, shape index: {}]
  %s6 = inlined_call_operand.vmem [shape: f32[1,128], index: 6, kind: input, shape index: {}]
  %s7 = inlined_call_operand.vmem [shape: f32[1,128], index: 7, kind: input, shape index: {}]
  %s8 = inlined_call_operand.vmem [shape: f32[8,1], index: 8, kind: output, shape index: {}]
  %s9 = sld [smem:[#allocation0]]
  $region42: #{tpu_custom_call.1} parent=0
    _
  %s11 = ssub.s32 1, %s9
  %s12 = scalar_select 0, %s11, %s9
  // Predicated region
  $region2: #{tpu_custom_call.1} parent=0 // pred_check
    _
  $region3: #{tpu_custom_call.1} parent=0 // pred_check_branch
    %14 = sbr.rel (0) target = $region5
  $region4: #{tpu_custom_call.1} parent=0 // pred_region
    _
  $region5: #{tpu_custom_call.1} parent=0 // pred_fallthru
    _
  // Predicated region
  $region6: #{tpu_custom_call.1} parent=0 // pred_check
    _
  $region7: #{tpu_custom_call.1} parent=0 // pred_check_branch
    %16 = sbr.rel (0) target = $region9
  $region8: #{tpu_custom_call.1} parent=0 // pred_region
    _
  $region9: #{tpu_custom_call.1} parent=0 // pred_fallthru
    _
  // Predicated region
  $region10: #{tpu_custom_call.1} parent=0 // pred_check
    _
  $region11: #{tpu_custom_call.1} parent=0 // pred_check_branch
    %18 = sbr.rel (0) target = $region13
  $region12: #{tpu_custom_call.1} parent=0 // pred_region
    _
  $region13: #{tpu_custom_call.1} parent=0 // pred_fallthru
    _
  // Predicated region
  $region14: #{tpu_custom_call.1} parent=0 // pred_check
    _
  $region15: #{tpu_custom_call.1} parent=0 // pred_check_branch
    %20 = sbr.rel (0) target = $region17
  $region16: #{tpu_custom_call.1} parent=0 // pred_region
    _
  $region17: #{tpu_custom_call.1} parent=0 // pred_fallthru
    _
  // Predicated region
  $region18: #{tpu_custom_call.1} parent=0 // pred_check
    _
  $region19: #{tpu_custom_call.1} parent=0 // pred_check_branch
    %22 = sbr.rel (0) target = $region21
  $region20: #{tpu_custom_call.1} parent=0 // pred_region
    _
  $region21: #{tpu_custom_call.1} parent=0 // pred_fallthru
    _
  // Predicated region
  $region22: #{tpu_custom_call.1} parent=0 // pred_check
    _
  $region23: #{tpu_custom_call.1} parent=0 // pred_check_branch
    %24 = sbr.rel (0) target = $region25
  $region24: #{tpu_custom_call.1} parent=0 // pred_region
    _
  $region25: #{tpu_custom_call.1} parent=0 // pred_fallthru
    _
  // Predicated region
  $region26: #{tpu_custom_call.1} parent=0 // pred_check
    _
  $region27: #{tpu_custom_call.1} parent=0 // pred_check_branch
    %26 = sbr.rel (0) target = $region29
  $region28: #{tpu_custom_call.1} parent=0 // pred_region
    _
  $region29: #{tpu_custom_call.1} parent=0 // pred_fallthru
    _
  // Predicated region
  $region30: #{tpu_custom_call.1} parent=0 // pred_check
    _
  $region31: #{tpu_custom_call.1} parent=0 // pred_check_branch
    %28 = sbr.rel (0) target = $region33
  $region32: #{tpu_custom_call.1} parent=0 // pred_region
    _
  $region33: #{tpu_custom_call.1} parent=0 // pred_fallthru
    _
  %v29 = vld [vmem:[%s0] sm:$0xff]
  %v30 = vld [vmem:[%s3] sm:$0x1]
  %v31 = vld [vmem:[%s2] sm:$0x1]
  %33 = vset.pattern.permute.xlu0 0
  %34 = vperm.xlu0 %33, %v29
  %v35 = vpop.permute.xlu0 %34
  %v37 = vlaneseq
  %v38 = vshrl.u32 %v37, 7
  %v39 = vsub.s32 0, %v38
  %v40 = vrot.slane %v31, %v39
  %v41 = vmul.f32 %v35, %v40
  %v43 = vlaneseq
  %v44 = vshrl.u32 %v43, 7
  %v45 = vsub.s32 0, %v44
  %v46 = vrot.slane %v30, %v45
  %v48 = vadd.f32 %v46, %v41
  %v49 = vld [vmem:[%s2 + $0x1] sm:$0x1]
  %50 = vset.pattern.permute.xlu0 1
  %51 = vperm.xlu0 %50, %v29
  %v52 = vpop.permute.xlu0 %51
  %v54 = vlaneseq
  %v55 = vshrl.u32 %v54, 7
  %v56 = vsub.s32 0, %v55
  %v57 = vrot.slane %v49, %v56
  %v58 = vmul.f32 %v52, %v57
  %v59 = vadd.f32 %v48, %v58
  %v60 = vld [vmem:[%s2 + $0x2] sm:$0x1]
  %61 = vset.pattern.permute.xlu0 2
  %62 = vperm.xlu0 %61, %v29
  %v63 = vpop.permute.xlu0 %62
  %v65 = vlaneseq
  %v66 = vshrl.u32 %v65, 7
  %v67 = vsub.s32 0, %v66
  %v68 = vrot.slane %v60, %v67
  %v69 = vmul.f32 %v63, %v68
  %v70 = vadd.f32 %v59, %v69
  %v71 = vld [vmem:[%s2 + $0x3] sm:$0x1]
  %72 = vset.pattern.permute.xlu0 3
  %73 = vperm.xlu0 %72, %v29
  %v74 = vpop.permute.xlu0 %73
  %v76 = vlaneseq
  %v77 = vshrl.u32 %v76, 7
  %v78 = vsub.s32 0, %v77
  %v79 = vrot.slane %v71, %v78
  %v80 = vmul.f32 %v74, %v79
  %v81 = vadd.f32 %v70, %v80
  %v82 = vld [vmem:[%s2 + $0x4] sm:$0x1]
  %83 = vset.pattern.permute.xlu0 4
  %84 = vperm.xlu0 %83, %v29
  %v85 = vpop.permute.xlu0 %84
  %v87 = vlaneseq
  %v88 = vshrl.u32 %v87, 7
  %v89 = vsub.s32 0, %v88
  %v90 = vrot.slane %v82, %v89
  %v91 = vmul.f32 %v85, %v90
  %v92 = vadd.f32 %v81, %v91
  %v93 = vld [vmem:[%s2 + $0x5] sm:$0x1]
  %94 = vset.pattern.permute.xlu0 5
  %95 = vperm.xlu0 %94, %v29
  %v96 = vpop.permute.xlu0 %95
  %v98 = vlaneseq
  %v99 = vshrl.u32 %v98, 7
  %v100 = vsub.s32 0, %v99
  %v101 = vrot.slane %v93, %v100
  %v102 = vmul.f32 %v96, %v101
  %v103 = vadd.f32 %v92, %v102
  %v104 = vld [vmem:[%s2 + $0x6] sm:$0x1]
  %105 = vset.pattern.permute.xlu0 6
  %106 = vperm.xlu0 %105, %v29
  %v107 = vpop.permute.xlu0 %106
  %v109 = vlaneseq
  %v110 = vshrl.u32 %v109, 7
  %v111 = vsub.s32 0, %v110
  %v112 = vrot.slane %v104, %v111
  %v113 = vmul.f32 %v107, %v112
  %v114 = vadd.f32 %v103, %v113
  %v115 = vld [vmem:[%s2 + $0x7] sm:$0x1]
  %116 = vset.pattern.permute.xlu0 7
  %117 = vperm.xlu0 %116, %v29
  %v118 = vpop.permute.xlu0 %117
  %v120 = vlaneseq
  %v121 = vshrl.u32 %v120, 7
  %v122 = vsub.s32 0, %v121
  %v123 = vrot.slane %v115, %v122
  %v124 = vmul.f32 %v118, %v123
  %v125 = vadd.f32 %v114, %v124
  %126 = vmax.xlane.f32.xlu0 %v125
  %v127 = vpop.xlane.xlu0 %126
  %v128 = vsub.f32 %v125, %v127
  %v129 = vmul.f32 %v128, 1.442695
  %v130 = vpow.pop %v129
  %131 = vadd.xlane.f32.xlu0 %v130
  %v132 = vpop.xlane.xlu0 %131
  %v133 = vmul.f32 %v132, 0.03125
  %v134 = vld [vmem:[%s1] sm:$0xff]
  %v135 = vld [vmem:[%s4] sm:$0x1]
  %137 = vset.pattern.permute.xlu0 0
  %138 = vperm.xlu0 %137, %v134
  %v139 = vpop.permute.xlu0 %138
  %v142 = vlaneseq
  %v143 = vshrl.u32 %v142, 7
  %v144 = vsub.s32 0, %v143
  %v145 = vrot.slane %v135, %v144
  %v147 = vmul.f32 %v139, %v145
  %v148 = vld [vmem:[%s5] sm:$0x1]
  %v150 = vlaneseq
  %v151 = vshrl.u32 %v150, 7
  %v152 = vsub.s32 0, %v151
  %v153 = vrot.slane %v148, %v152
  %v155 = vadd.f32 %v147, %v153
  %v156 = vmax.f32 %v155, 0.0
  %v157 = vld [vmem:[%s6] sm:$0x1]
  %v159 = vlaneseq
  %v160 = vshrl.u32 %v159, 7
  %v161 = vsub.s32 0, %v160
  %v162 = vrot.slane %v157, %v161
  %v164 = vmul.f32 %v156, %v162
  %v165 = vld [vmem:[%s7] sm:$0x1]
  %v167 = vlaneseq
  %v168 = vshrl.u32 %v167, 7
  %v169 = vsub.s32 0, %v168
  %v170 = vrot.slane %v165, %v169
  %v172 = vadd.f32 %v164, %v170
  %v173 = vmul.f32 %v130, %v172
  %174 = vadd.xlane.f32.xlu0 %v173
  %v175 = vpop.xlane.xlu0 %174
  %v176 = vrcp.pop %v133
  %v177 = vmul.f32 %v175, %v176
  %vm178 = vcmask 7168
  %179 = vst.msk [vmem:[%s8] sm:$0xff] %vm178, %v177
  // Predicated region
  $region34: #{tpu_custom_call.1} parent=0 // pred_check
    _
  $region35: #{tpu_custom_call.1} parent=0 // pred_check_branch
    %181 = sbr.rel (0) target = $region37
  $region36: #{tpu_custom_call.1} parent=0 // pred_region
    _
  $region37: #{tpu_custom_call.1} parent=0 // pred_fallthru
    _
  // Predicated region
  $region38: #{tpu_custom_call.1} parent=0 // pred_check
    _
  $region39: #{tpu_custom_call.1} parent=0 // pred_check_branch
    %183 = sbr.rel (0) target = $region41
  $region40: #{tpu_custom_call.1} parent=0 // pred_region
    _
  $region41: #{tpu_custom_call.1} parent=0 // pred_fallthru
    _

</llo_original>
